<compile_context>
chip_gen: v6e
topology: v6e:2x2x1
jax: 0.10.0
libtpu: 0.0.40
codegen_flags: <defaults>
</compile_context>

<pallas_src>
import functools
import math

import jax
import jax.numpy as jnp
from jax.experimental import pallas as pl
from jax.experimental.pallas import tpu as pltpu


def make_pe_table(d_model: int, max_len: int = 5000, dtype=jnp.float32):
    """Sinusoidal table exactly like the PyTorch __init__, shape (max_len, d_model).
    Build once in the compute dtype and reuse across calls."""
    position = jnp.arange(max_len, dtype=jnp.float32)[:, None]
    div_term = jnp.exp(jnp.arange(0, d_model, 2, dtype=jnp.float32)
                       * (-math.log(10000.0) / d_model))
    pe = jnp.zeros((max_len, d_model), dtype=jnp.float32)
    pe = pe.at[:, 0::2].set(jnp.sin(position * div_term))
    pe = pe.at[:, 1::2].set(jnp.cos(position * div_term))
    return pe.astype(dtype)


def _pe_kernel(seed_ref, x_ref, pe_ref, o_ref, *,
               dropout_p: float, training: bool, total_cols: int):
    # x_ref / o_ref: (tb, tc) block of the flattened (B, S*D) array.
    # pe_ref:        (1, tc) block of the flattened (1, S*D) table (broadcast over rows).
    y = x_ref[...] + pe_ref[...]

    if (not training) or dropout_p <= 0.0:
        o_ref[...] = y.astype(o_ref.dtype)
        return
    if dropout_p >= 1.0:                      # torch.nn.Dropout(p=1.0) zeroes everything
        o_ref[...] = jnp.zeros(y.shape, dtype=o_ref.dtype)
        return

    tb, tc = y.shape
    # Globally unique uint32 counter per element of the (B, S*D) tensor.
    # (Wraps mod 2^32: counters only collide for > 4e9-element tensors.)
    row0 = (pl.program_id(1) * tb).astype(jnp.uint32)
    col0 = (pl.program_id(0) * tc).astype(jnp.uint32)
    rows = jax.lax.broadcasted_iota(jnp.int32, (tb, tc), 0).astype(jnp.uint32) + row0
    cols = jax.lax.broadcasted_iota(jnp.int32, (tb, tc), 1).astype(jnp.uint32) + col0
    h = (seed_ref[0].astype(jnp.uint32) * jnp.uint32(0x9E3779B9)
         + rows * jnp.uint32(total_cols) + cols)
    # Trimmed lowbias32-style mixer (final xor-shift dropped: the threshold test only
    # needs well-mixed high bits, which the second multiply provides).
    h = h ^ (h >> 16)
    h = h * jnp.uint32(0x7FEB352D)
    h = h ^ (h >> 15)
    h = h * jnp.uint32(0x846CA68B)
    # Integer-domain keep test: P(drop) == dropout_p to 2^-32 granularity.
    thresh = jnp.uint32(min(int(dropout_p * 4294967296.0), 4294967295))
    keep = h >= thresh
    # Scale/zero in f32, cast once at the end (avoids bf16 scale bias).
    scale = jnp.float32(1.0 / (1.0 - dropout_p))
    o_ref[...] = jnp.where(keep, y.astype(jnp.float32) * scale,
                           jnp.float32(0.0)).astype(o_ref.dtype)


def _sublane_pack(itemsize: int) -> int:
    # Rows per packed vreg sublane group: 8 for f32, 16 for bf16, 32 for int8/fp8.
    return max(8, 32 // itemsize)


def _vmem_caps():
    try:
        cap = int(pltpu.get_tpu_info().vmem_capacity_bytes)
    except Exception:
        cap = 64 << 20          # conservative fallback: v7x per-TensorCore VMEM
    budget = (cap * 5) // 8     # working-set budget: 40 MiB on 64 MiB parts, 80 MiB on 128 MiB
    limit_cap = (cap * 3) // 4  # vmem_limit cap: 48 MiB (v7x) / 96 MiB (v5e, v6e)
    return budget, limit_cap


def _choose_tiles(B: int, N: int, itemsize: int, budget_bytes: int,
                  target_bytes: int = 2 << 20):
    """Block shape for the flattened (B, N) array: ~target_bytes per block (1-4 MiB
    streams near the HBM roofline and amortizes per-step overhead), last dim a
    multiple of 128 (or full extent), rows sublane-pack aligned (or full extent)."""
    pack = _sublane_pack(itemsize)
    if N < 128:
        tc = N                                              # full extent (always legal)
    else:
        tc_want = max(128, ((target_bytes // (pack * itemsize)) // 128) * 128)
        tc_cap = ((N + 127) // 128) * 128                   # no point tiling wider than N
        tc = min(tc_want, tc_cap)
    row_bytes = tc * itemsize
    # Live VMEM: double-buffered x + out blocks (4 * tb rows) + double-buffered PE row.
    max_rows = max(1, (budget_bytes - 2 * row_bytes) // (4 * row_bytes))
    want_rows = max(1, target_bytes // row_bytes)
    tb = min(B, want_rows, max_rows)
    if tb < B:
        tb = max(pack, (tb // pack) * pack)
        if tb >= B:
            tb = B
    return int(tb), int(tc)


def positional_encoding(x, pe_table, *, dropout_p: float = 0.1,
                        training: bool = False, seed: int = 0):
    """x: (B, S, D). Returns dropout(x + pe_table[:S][None]) via a Pallas TPU kernel."""
    B, S, D = x.shape
    N = S * D
    if pe_table.dtype != x.dtype:          # table should already be stored in x.dtype
        pe_table = pe_table.astype(x.dtype)

    # Lane-dense flattening (pure reshape for this elementwise op).
    x2 = x.reshape(B, N)
    pe2 = pe_table[:S].reshape(1, N)

    itemsize = jnp.dtype(x.dtype).itemsize
    budget, limit_cap = _vmem_caps()
    tb, tc = _choose_tiles(B, N, itemsize, budget)
    num_c = -(-N // tc)
    num_b = -(-B // tb)

    tile_bytes = tb * tc * itemsize
    vmem_limit = int(min(4 * tile_bytes + 2 * tc * itemsize + (4 << 20), limit_cap))
    vmem_limit = max(vmem_limit, 16 << 20)

    kernel = functools.partial(_pe_kernel,
                               dropout_p=float(dropout_p),
                               training=bool(training),
                               total_cols=int(N))

    # Grid: lane/sequence tile OUTER, batch INNER -> the PE block index (0, c) is
    # constant across consecutive batch iterations, so its DMA is skipped and the
    # PE table is fetched from HBM once per lane tile instead of once per batch row.
    out2 = pl.pallas_call(
        kernel,
        out_shape=jax.ShapeDtypeStruct((B, N), x.dtype),
        grid_spec=pltpu.PrefetchScalarGridSpec(
            num_scalar_prefetch=1,                            # seed lands in SMEM
            grid=(num_c, num_b),
            in_specs=[
                pl.BlockSpec((tb, tc), lambda c, b, seed_ref: (b, c)),
                pl.BlockSpec((1, tc), lambda c, b, seed_ref: (0, c)),
            ],
            out_specs=pl.BlockSpec((tb, tc), lambda c, b, seed_ref: (b, c)),
        ),
        compiler_params=pltpu.CompilerParams(
            dimension_semantics=("parallel", "parallel"),
            vmem_limit_bytes=vmem_limit,
        ),
        # Optional (when the caller donates x): input_output_aliases={1: 0} halves the
        # peak HBM footprint; left off by default since it does not change bandwidth.
    )(jnp.asarray([seed], dtype=jnp.int32), x2, pe2)

    return out2.reshape(B, S, D)


if __name__ == "__main__":
    B, S, D = 2, 8, 32          # batch, seq, d_model
    key = jax.random.PRNGKey(0)
    x = jax.random.normal(key, (B, S, D), dtype=jnp.float32)

    pe_table = make_pe_table(d_model=D, max_len=5000, dtype=x.dtype)

    # Eval mode (dropout = identity): must match x + pe exactly.
    out_eval = positional_encoding(x, pe_table, dropout_p=0.1, training=False)
    out_eval = jax.block_until_ready(out_eval)
    ref = x + pe_table[:S][None, :, :]
    assert out_eval.shape == (B, S, D)
    assert jnp.allclose(out_eval, ref, atol=1e-6), "eval-mode mismatch vs reference"

    # Training mode: exercise the in-kernel dropout path (deterministic given seed).
    # TODO(synk): the dropout mask stream is counter-hash based, not bit-identical to
    # torch.nn.Dropout's RNG (unavoidable across frameworks).
    p = 0.1
    out_train = positional_encoding(x, pe_table, dropout_p=p, training=True, seed=1234)
    out_train = jax.block_until_ready(out_train)
    assert out_train.shape == (B, S, D)
    scaled_ref = ref / (1.0 - p)
    ok = jnp.isclose(out_train, scaled_ref, atol=1e-5) | (out_train == 0)
    assert bool(jnp.all(ok)), "train-mode values are neither kept-scaled nor dropped"

    print("KERNEL_OK")
</pallas_src>

<mosaic_0001>
module attributes {stable_mosaic.version = 11 : i64} {
  func.func @_pe_kernel(%arg0: i32, %arg1: i32, %arg2: memref<1xi32, #tpu.memory_space<smem>>, %arg3: memref<2x256xf32, #tpu.memory_space<vmem>>, %arg4: memref<1x256xf32, #tpu.memory_space<vmem>>, %arg5: memref<2x256xf32, #tpu.memory_space<vmem>>) attributes {dimension_semantics = [#tpu.dimension_semantics<parallel>, #tpu.dimension_semantics<parallel>], iteration_bounds = array<i64: 1, 1>, scalar_prefetch = 1 : i64, scratch_operands = 0 : i64, tpu.core_type = #tpu.core_type<tc>, window_params = [{transform_indices = @transform_0, window_bounds = array<i64: 2, 256>}, {transform_indices = @transform_1, window_bounds = array<i64: 1, 256>}, {transform_indices = @transform_2, window_bounds = array<i64: 2, 256>}]} {
    %c0 = arith.constant 0 : index
    %c0_0 = arith.constant 0 : index
    %0 = vector.load %arg3[%c0, %c0_0] : memref<2x256xf32, #tpu.memory_space<vmem>>, vector<2x256xf32>
    %c0_1 = arith.constant 0 : index
    %c0_2 = arith.constant 0 : index
    %1 = vector.load %arg4[%c0_1, %c0_2] : memref<1x256xf32, #tpu.memory_space<vmem>>, vector<1x256xf32>
    %2 = vector.broadcast %1 : vector<1x256xf32> to vector<2x256xf32>
    %3 = arith.addf %0, %2 : vector<2x256xf32>
    %c0_3 = arith.constant 0 : index
    %c0_4 = arith.constant 0 : index
    %4 = vector.load %arg5[%c0_3, %c0_4] : memref<2x256xf32, #tpu.memory_space<vmem>>, vector<2x256xf32>
    tpu.vector_store %arg5[%c0_3, %c0_4], %3 {strides = array<i32>} : memref<2x256xf32, #tpu.memory_space<vmem>>, vector<2x256xf32>,
    return
  }
  func.func @transform_0(%arg0: i32, %arg1: i32, %arg2: memref<1xi32, #tpu.memory_space<smem>>) -> (i32, i32) {
    %c0_i32 = arith.constant 0 : i32
    return %arg1, %arg0 : i32, i32
  }
  func.func @transform_1(%arg0: i32, %arg1: i32, %arg2: memref<1xi32, #tpu.memory_space<smem>>) -> (i32, i32) {
    %c0_i32 = arith.constant 0 : i32
    %c0_i32_0 = arith.constant 0 : i32
    return %c0_i32, %arg0 : i32, i32
  }
  func.func @transform_2(%arg0: i32, %arg1: i32, %arg2: memref<1xi32, #tpu.memory_space<smem>>) -> (i32, i32) {
    %c0_i32 = arith.constant 0 : i32
    return %arg1, %arg0 : i32, i32
  }
}

</mosaic_0001>

<llo_original>
// kernel: tpu_custom_call.1
$region0: #{tpu_custom_call.1}
  #allocation0 [shape = 'u32[]', space=smem, size = 0x4, offset = 0x4, fixed_abs, tag = 'smem constant byte address 0x4 - core index']
  #allocation1 [shape = 'u32[144,128]{1,0:T(1,128)}', space=vmem, size = 0x12000, scoped, tag = 'internal scratch']
  #allocation2 [shape = 's32[1]{0}', space=sflag, size = 0x4, scoped, tag = 'scoped memory for tpu_custom_call.1']
  #allocation3 [shape = 's32[1]{0:T(128)S(6)}', space=smem, size = 0x200, scoped, tag = 'prefetched SMEM operand 0']
  %s0 = inlined_call_operand.<no memory space> [shape: s32[1], index: 0, kind: input, shape index: {}]
  %s1 = inlined_call_operand.hbm [shape: f32[2,256], index: 1, kind: input, shape index: {}]
  %s2 = inlined_call_operand.vmem [shape: f32[1,256], index: 2, kind: input, shape index: {}]
  %s3 = inlined_call_operand.hbm [shape: f32[2,256], index: 3, kind: output, shape index: {}]
  %s4 = sld [smem:[#allocation0]]
  $region22: #{tpu_custom_call.1} parent=0
    _
  %s6 = ssub.s32 1, %s4
  %s7 = scalar_select 0, %s6, %s4
  %8 = sst [smem:[#allocation3]] %s0
  $region1: #{tpu_custom_call.1} parent=0
    #allocation4 [shape = 'u8[2048]{0}', space=vmem, size = 0x800, scoped, tag = 'input window, operand 1, single buffered']
    #allocation5 [shape = 's32[1]{0}', space=sflag, size = 0x4, scoped, tag = 'scoped memory for tpu_custom_call.1']
    #allocation6 [shape = 's32[1]{0}', space=sflag, size = 0x4, scoped, tag = 'scoped memory for tpu_custom_call.1']
    #allocation7 [shape = 'u8[2048]{0}', space=vmem, size = 0x800, scoped, tag = 'output window, operand 0, single buffered']
    %9 = vsyncpa [#allocation5], 0
    %10 = vsyncpa [#allocation6], 0
    // Predicated region
    $region2: #{tpu_custom_call.1} parent=1 // pred_check
      _
    $region3: #{tpu_custom_call.1} parent=1 // pred_check_branch
      %12 = sbr.rel (0) target = $region5
    $region4: #{tpu_custom_call.1} parent=1 // pred_region
      %s14 = ssub.s32 64, 64
      %15 = vsyncadd [#allocation5], %s14
      %s17 = sshll.u32 [#allocation4], 4
      %s18 = int_to_ptr.vmem [resolvable:$true] %s17
      %20 = dma.hbm_to_vmem [thread:$0]  %s1, 64, %s18, [#allocation5]
    $region5: #{tpu_custom_call.1} parent=1 // pred_fallthru
      _
    // Predicated region
    $region6: #{tpu_custom_call.1} parent=1 // pred_check
      _
    $region7: #{tpu_custom_call.1} parent=1 // pred_check_branch
      %22 = sbr.rel (0) target = $region9
    $region8: #{tpu_custom_call.1} parent=1 // pred_region
      _
    $region9: #{tpu_custom_call.1} parent=1 // pred_fallthru
      _
    // Predicated region
    $region10: #{tpu_custom_call.1} parent=1 // pred_check
      _
    $region11: #{tpu_custom_call.1} parent=1 // pred_check_branch
      %24 = sbr.rel (0) target = $region13
    $region12: #{tpu_custom_call.1} parent=1 // pred_region
      %25 = dma.done [#allocation5], 64
    $region13: #{tpu_custom_call.1} parent=1 // pred_fallthru
      _
    %v26 = vld [vmem:[#allocation4] sm:$0xf]
    %v27 = vld [vmem:[%s2] sm:$0x3]
    %v29 = vlaneseq
    %v30 = vshrl.u32 %v29, 7
    %v31 = vsub.s32 0, %v30
    %v32 = vrot.slane %v27, %v31
    %v33 = vlaneseq
    %v34 = vshrl.u32 %v33, 7
    %v35 = vsub.s32 1, %v34
    %v36 = vrot.slane %v27, %v35
    %v37 = vcombine.low %v32, %v36
    %v39 = vunpack.c.l.s4 1983009808
    %v40 = vunpack.c.0.s8 %v39
    %v41 = vlaneseq
    %v42 = vshrl.u32 %v41, 7
    %v43 = vsub.s32 %v40, %v42
    %v44 = vrot.slane %v37, %v43
    %v46 = vadd.f32 %v26, %v44
    %47 = vst [vmem:[#allocation7] sm:$0xf] %v46
    // Predicated region
    $region14: #{tpu_custom_call.1} parent=1 // pred_check
      _
    $region15: #{tpu_custom_call.1} parent=1 // pred_check_branch
      %49 = sbr.rel (0) target = $region17
    $region16: #{tpu_custom_call.1} parent=1 // pred_region
      %s51 = ssub.s32 64, 64
      %52 = vsyncadd [#allocation6], %s51
      %s54 = sshll.u32 [#allocation7], 4
      %s55 = int_to_ptr.vmem [resolvable:$true] %s54
      %57 = dma.vmem_to_hbm [thread:$0]  %s55, 64, %s3, [#allocation6]
    $region17: #{tpu_custom_call.1} parent=1 // pred_fallthru
      _
    // Predicated region
    $region18: #{tpu_custom_call.1} parent=1 // pred_check
      _
    $region19: #{tpu_custom_call.1} parent=1 // pred_check_branch
      %59 = sbr.rel (0) target = $region21
    $region20: #{tpu_custom_call.1} parent=1 // pred_region
      %60 = dma.done [#allocation6], 64
    $region21: #{tpu_custom_call.1} parent=1 // pred_fallthru
      _
    %61 = vsyncpa [#allocation5], 1
    %62 = vsyncpa [#allocation6], 1

</llo_original>
